<compile_context>
chip_gen: v5e
topology: v5e:2x2
jax: 0.10.0
libtpu: 0.0.40
codegen_flags: <defaults>
</compile_context>

<pallas_src>
import jax
import jax.numpy as jnp
from jax.experimental import pallas as pl
from jax.experimental.pallas import tpu as pltpu

LANE = 128     # lane width (last dim)
SUBLANE = 8    # f32 sublane count (second-to-last dim)


def _round_up(n, m):
    return ((n + m - 1) // m) * m


def _mlp_kernel(x_ref,
                w1_ref, b1_ref,
                w2_ref, b2_ref,
                w3_ref, b3_ref,
                w4_ref, b4_ref,
                o_ref):
    """Fused 4-layer MLP for one (TB, F) batch tile.

    MXU inputs in the weights' dtype (bf16), accumulation / bias / ReLU in f32.
    """
    x = x_ref[...].astype(w1_ref.dtype)

    h = jnp.dot(x, w1_ref[...], preferred_element_type=jnp.float32) + b1_ref[...]
    h = jnp.maximum(h, 0.0).astype(w2_ref.dtype)

    h = jnp.dot(h, w2_ref[...], preferred_element_type=jnp.float32) + b2_ref[...]
    h = jnp.maximum(h, 0.0).astype(w3_ref.dtype)

    h = jnp.dot(h, w3_ref[...], preferred_element_type=jnp.float32) + b3_ref[...]
    h = jnp.maximum(h, 0.0).astype(w4_ref.dtype)

    y = jnp.dot(h, w4_ref[...], preferred_element_type=jnp.float32) + b4_ref[...]
    o_ref[...] = y.astype(o_ref.dtype)


def prepare_params(params, param_dtype=jnp.bfloat16):
    """One-time (outside the hot path) padding + cast of the parameters.

    Hidden width is zero-padded to 128 lanes; the final weight is only
    row-padded so the kernel emits the narrow (TB, O) output directly.
    Zero padding of weight columns / bias entries is numerically exact.
    """
    F = params["w1"].shape[0]
    H = params["w1"].shape[1]
    O = params["w4"].shape[1]
    Hp = _round_up(max(H, LANE), LANE)

    def padw(a, rows, cols):
        return jnp.pad(a, ((0, rows - a.shape[0]),
                           (0, cols - a.shape[1]))).astype(param_dtype)

    def padb(a, cols):
        return jnp.pad(a, ((0, 0), (0, cols - a.shape[1]))).astype(jnp.float32)

    return dict(
        w1=padw(params["w1"], F, Hp),  b1=padb(params["b1"], Hp),
        w2=padw(params["w2"], Hp, Hp), b2=padb(params["b2"], Hp),
        w3=padw(params["w3"], Hp, Hp), b3=padb(params["b3"], Hp),
        w4=padw(params["w4"], Hp, O),  b4=padb(params["b4"], O),
    )


def eegnet_forward(x, prep, *, block_b=1024):
    """EegNet forward pass via one pallas_call.

    x:    (B, input_features), f32 or bf16 (bf16 halves the input HBM stream).
    prep: output of prepare_params() (pre-padded bf16 weights, f32 biases).
    """
    B, F = x.shape
    w1, b1 = prep["w1"], prep["b1"]
    w2, b2 = prep["w2"], prep["b2"]
    w3, b3 = prep["w3"], prep["b3"]
    w4, b4 = prep["w4"], prep["b4"]
    assert w1.shape[0] == F, "input feature mismatch vs prepared params"
    Hp = w1.shape[1]
    O = w4.shape[1]

    # Batch tile: 8-aligned, amortizes per-step overhead, but capped so the
    # grid has >=2 steps whenever B allows (v7x megacore gets both TCs busy).
    if B <= SUBLANE:
        TB = B                                     # single full-dim tile
    else:
        two_way = _round_up(pl.cdiv(B, 2), SUBLANE)
        TB = max(SUBLANE, min(_round_up(block_b, SUBLANE), two_way))
    grid = (pl.cdiv(B, TB),)                       # ragged tail OK: rows indep.

    def _x_map(i):
        return (i, 0)

    def _const_map(i):
        return (0, 0)

    in_specs = [
        pl.BlockSpec((TB, F), _x_map),             # x marches with the grid
        pl.BlockSpec(w1.shape, _const_map),        # params resident in VMEM
        pl.BlockSpec(b1.shape, _const_map),
        pl.BlockSpec(w2.shape, _const_map),
        pl.BlockSpec(b2.shape, _const_map),
        pl.BlockSpec(w3.shape, _const_map),
        pl.BlockSpec(b3.shape, _const_map),
        pl.BlockSpec(w4.shape, _const_map),
        pl.BlockSpec(b4.shape, _const_map),
    ]
    # Narrow, un-padded output: (TB, O) with O == full last dim (legal block).
    out_spec = pl.BlockSpec((TB, O), _x_map)

    itemsize = lambda a: a.size * a.dtype.itemsize
    flops = 2 * B * (F * Hp + 2 * Hp * Hp + Hp * O)
    bytes_accessed = (itemsize(x) + B * O * 4
                      + sum(itemsize(a) for a in (w1, b1, w2, b2, w3, b3, w4, b4)))
    cost = pl.CostEstimate(flops=flops, transcendentals=0,
                           bytes_accessed=bytes_accessed)

    return pl.pallas_call(
        _mlp_kernel,
        out_shape=jax.ShapeDtypeStruct((B, O), jnp.float32),
        grid=grid,
        in_specs=in_specs,
        out_specs=out_spec,
        compiler_params=pltpu.CompilerParams(
            dimension_semantics=("parallel",),     # batch tiles -> both TCs on v7x
        ),
        cost_estimate=cost,
    )(x, w1, b1, w2, b2, w3, b3, w4, b4)


def init_params(key, input_features, output_features, hidden_units=8):
    """Deterministic parameter init (Kaiming-uniform-ish, like nn.Linear)."""
    def linear_init(k, fan_in, fan_out):
        kw, kb = jax.random.split(k)
        bound = 1.0 / jnp.sqrt(jnp.float32(fan_in))
        # Stored as (in, out) so the kernel does x @ W (== x @ W_torch.T).
        w = jax.random.uniform(kw, (fan_in, fan_out), jnp.float32, -bound, bound)
        b = jax.random.uniform(kb, (1, fan_out), jnp.float32, -bound, bound)
        return w, b

    k1, k2, k3, k4 = jax.random.split(key, 4)
    w1, b1 = linear_init(k1, input_features, hidden_units)
    w2, b2 = linear_init(k2, hidden_units, hidden_units)
    w3, b3 = linear_init(k3, hidden_units, hidden_units)
    w4, b4 = linear_init(k4, hidden_units, output_features)
    return dict(w1=w1, b1=b1, w2=w2, b2=b2, w3=w3, b3=b3, w4=w4, b4=b4)


def eegnet_reference(x, params, param_dtype=jnp.bfloat16):
    """Pure-JAX reference with the same bf16-weight / f32-accumulate recipe.

    Note: bf16 weights deviate from an exact f32 PyTorch EegNet by ~1e-2 rel.;
    set param_dtype=jnp.float32 in prepare_params/here if exact parity with an
    f32 model is required.
    """
    def layer(h, w, b, relu):
        y = jnp.dot(h.astype(param_dtype), w.astype(param_dtype),
                    preferred_element_type=jnp.float32) + b
        return jnp.maximum(y, 0.0) if relu else y

    h = layer(x, params["w1"], params["b1"], True)
    h = layer(h, params["w2"], params["b2"], True)
    h = layer(h, params["w3"], params["b3"], True)
    return layer(h, params["w4"], params["b4"], False)


if __name__ == "__main__":
    # Small shapes consistent with the module (features in/out + hidden units).
    batch = 32                 # small, but >8 so the batch grid has >=2 steps
    input_features = 16
    hidden_units = 32
    output_features = 8

    key = jax.random.PRNGKey(0)
    kx, kp = jax.random.split(key)
    x = jax.random.normal(kx, (batch, input_features), dtype=jnp.float32)
    params = init_params(kp, input_features, output_features, hidden_units)
    prep = prepare_params(params)      # one-time pad + bf16 cast (off hot path)

    out = eegnet_forward(x, prep)
    out = jax.block_until_ready(out)

    ref = eegnet_reference(x, params)
    assert out.shape == (batch, output_features)
    assert jnp.allclose(out, ref, atol=1e-3, rtol=1e-3), "mismatch vs reference"

    print("KERNEL_OK")
</pallas_src>

<mosaic_0001>
module attributes {stable_mosaic.version = 11 : i64} {
  func.func @_mlp_kernel(%arg0: i32, %arg1: memref<16x16xf32, #tpu.memory_space<vmem>>, %arg2: memref<16x128xbf16, #tpu.memory_space<vmem>>, %arg3: memref<1x128xf32, #tpu.memory_space<vmem>>, %arg4: memref<128x128xbf16, #tpu.memory_space<vmem>>, %arg5: memref<1x128xf32, #tpu.memory_space<vmem>>, %arg6: memref<128x128xbf16, #tpu.memory_space<vmem>>, %arg7: memref<1x128xf32, #tpu.memory_space<vmem>>, %arg8: memref<128x8xbf16, #tpu.memory_space<vmem>>, %arg9: memref<1x8xf32, #tpu.memory_space<vmem>>, %arg10: memref<16x8xf32, #tpu.memory_space<vmem>>) attributes {dimension_semantics = [#tpu.dimension_semantics<parallel>], iteration_bounds = array<i64: 2>, scalar_prefetch = 0 : i64, scratch_operands = 0 : i64, tpu.core_type = #tpu.core_type<tc>, window_params = [{transform_indices = @transform_0, window_bounds = array<i64: 16, 16>}, {pipeline_mode = #tpu.pipeline_mode<synchronous>, transform_indices = @transform_1, window_bounds = array<i64: 16, 128>}, {pipeline_mode = #tpu.pipeline_mode<synchronous>, transform_indices = @transform_2, window_bounds = array<i64: 1, 128>}, {pipeline_mode = #tpu.pipeline_mode<synchronous>, transform_indices = @transform_3, window_bounds = array<i64: 128, 128>}, {pipeline_mode = #tpu.pipeline_mode<synchronous>, transform_indices = @transform_4, window_bounds = array<i64: 1, 128>}, {pipeline_mode = #tpu.pipeline_mode<synchronous>, transform_indices = @transform_5, window_bounds = array<i64: 128, 128>}, {pipeline_mode = #tpu.pipeline_mode<synchronous>, transform_indices = @transform_6, window_bounds = array<i64: 1, 128>}, {pipeline_mode = #tpu.pipeline_mode<synchronous>, transform_indices = @transform_7, window_bounds = array<i64: 128, 8>}, {pipeline_mode = #tpu.pipeline_mode<synchronous>, transform_indices = @transform_8, window_bounds = array<i64: 1, 8>}, {transform_indices = @transform_9, window_bounds = array<i64: 16, 8>}]} {
    %c0 = arith.constant 0 : index
    %c0_0 = arith.constant 0 : index
    %0 = vector.load %arg1[%c0, %c0_0] : memref<16x16xf32, #tpu.memory_space<vmem>>, vector<16x16xf32>
    %1 = arith.truncf %0 : vector<16x16xf32> to vector<16x16xbf16>
    %c0_1 = arith.constant 0 : index
    %c0_2 = arith.constant 0 : index
    %2 = vector.load %arg2[%c0_1, %c0_2] : memref<16x128xbf16, #tpu.memory_space<vmem>>, vector<16x128xbf16>
    %cst = arith.constant dense<0.000000e+00> : vector<16x128xf32>
    %3 = tpu.matmul %1, %2, %cst {dimension_numbers = #tpu.dot_dimension_numbers<[1], [0], [0], [1], [0, 0, 1, 1], [], []>} : vector<16x16xbf16>, vector<16x128xbf16>, vector<16x128xf32> -> vector<16x128xf32>
    %c0_3 = arith.constant 0 : index
    %c0_4 = arith.constant 0 : index
    %4 = vector.load %arg3[%c0_3, %c0_4] : memref<1x128xf32, #tpu.memory_space<vmem>>, vector<1x128xf32>
    %5 = vector.broadcast %4 : vector<1x128xf32> to vector<16x128xf32>
    %6 = arith.addf %3, %5 : vector<16x128xf32>
    %cst_5 = arith.constant 0.000000e+00 : f32
    %7 = vector.broadcast %cst_5 : f32 to vector<16x128xf32>
    %8 = arith.maximumf %6, %7 : vector<16x128xf32>
    %9 = arith.truncf %8 : vector<16x128xf32> to vector<16x128xbf16>
    %c0_6 = arith.constant 0 : index
    %c0_7 = arith.constant 0 : index
    %10 = vector.load %arg4[%c0_6, %c0_7] : memref<128x128xbf16, #tpu.memory_space<vmem>>, vector<128x128xbf16>
    %cst_8 = arith.constant dense<0.000000e+00> : vector<16x128xf32>
    %11 = tpu.matmul %9, %10, %cst_8 {dimension_numbers = #tpu.dot_dimension_numbers<[1], [0], [0], [1], [0, 0, 1, 1], [], []>} : vector<16x128xbf16>, vector<128x128xbf16>, vector<16x128xf32> -> vector<16x128xf32>
    %c0_9 = arith.constant 0 : index
    %c0_10 = arith.constant 0 : index
    %12 = vector.load %arg5[%c0_9, %c0_10] : memref<1x128xf32, #tpu.memory_space<vmem>>, vector<1x128xf32>
    %13 = vector.broadcast %12 : vector<1x128xf32> to vector<16x128xf32>
    %14 = arith.addf %11, %13 : vector<16x128xf32>
    %cst_11 = arith.constant 0.000000e+00 : f32
    %15 = vector.broadcast %cst_11 : f32 to vector<16x128xf32>
    %16 = arith.maximumf %14, %15 : vector<16x128xf32>
    %17 = arith.truncf %16 : vector<16x128xf32> to vector<16x128xbf16>
    %c0_12 = arith.constant 0 : index
    %c0_13 = arith.constant 0 : index
    %18 = vector.load %arg6[%c0_12, %c0_13] : memref<128x128xbf16, #tpu.memory_space<vmem>>, vector<128x128xbf16>
    %cst_14 = arith.constant dense<0.000000e+00> : vector<16x128xf32>
    %19 = tpu.matmul %17, %18, %cst_14 {dimension_numbers = #tpu.dot_dimension_numbers<[1], [0], [0], [1], [0, 0, 1, 1], [], []>} : vector<16x128xbf16>, vector<128x128xbf16>, vector<16x128xf32> -> vector<16x128xf32>
    %c0_15 = arith.constant 0 : index
    %c0_16 = arith.constant 0 : index
    %20 = vector.load %arg7[%c0_15, %c0_16] : memref<1x128xf32, #tpu.memory_space<vmem>>, vector<1x128xf32>
    %21 = vector.broadcast %20 : vector<1x128xf32> to vector<16x128xf32>
    %22 = arith.addf %19, %21 : vector<16x128xf32>
    %cst_17 = arith.constant 0.000000e+00 : f32
    %23 = vector.broadcast %cst_17 : f32 to vector<16x128xf32>
    %24 = arith.maximumf %22, %23 : vector<16x128xf32>
    %25 = arith.truncf %24 : vector<16x128xf32> to vector<16x128xbf16>
    %c0_18 = arith.constant 0 : index
    %c0_19 = arith.constant 0 : index
    %26 = vector.load %arg8[%c0_18, %c0_19] : memref<128x8xbf16, #tpu.memory_space<vmem>>, vector<128x8xbf16>
    %cst_20 = arith.constant dense<0.000000e+00> : vector<16x8xf32>
    %27 = tpu.matmul %25, %26, %cst_20 {dimension_numbers = #tpu.dot_dimension_numbers<[1], [0], [0], [1], [0, 0, 1, 1], [], []>} : vector<16x128xbf16>, vector<128x8xbf16>, vector<16x8xf32> -> vector<16x8xf32>
    %c0_21 = arith.constant 0 : index
    %c0_22 = arith.constant 0 : index
    %28 = vector.load %arg9[%c0_21, %c0_22] : memref<1x8xf32, #tpu.memory_space<vmem>>, vector<1x8xf32>
    %29 = vector.broadcast %28 : vector<1x8xf32> to vector<16x8xf32>
    %30 = arith.addf %27, %29 : vector<16x8xf32>
    %c0_23 = arith.constant 0 : index
    %c0_24 = arith.constant 0 : index
    %31 = vector.load %arg10[%c0_23, %c0_24] : memref<16x8xf32, #tpu.memory_space<vmem>>, vector<16x8xf32>
    tpu.vector_store %arg10[%c0_23, %c0_24], %30 {strides = array<i32>} : memref<16x8xf32, #tpu.memory_space<vmem>>, vector<16x8xf32>,
    return
  }
  func.func @transform_0(%arg0: i32) -> (i32, i32) {
    %c0_i32 = arith.constant 0 : i32
    %c0_i32_0 = arith.constant 0 : i32
    return %arg0, %c0_i32 : i32, i32
  }
  func.func @transform_1(%arg0: i32) -> (i32, i32) {
    %c0_i32 = arith.constant 0 : i32
    %c0_i32_0 = arith.constant 0 : i32
    %c0_i32_1 = arith.constant 0 : i32
    return %c0_i32, %c0_i32_0 : i32, i32
  }
  func.func @transform_2(%arg0: i32) -> (i32, i32) {
    %c0_i32 = arith.constant 0 : i32
    %c0_i32_0 = arith.constant 0 : i32
    %c0_i32_1 = arith.constant 0 : i32
    return %c0_i32, %c0_i32_0 : i32, i32
  }
  func.func @transform_3(%arg0: i32) -> (i32, i32) {
    %c0_i32 = arith.constant 0 : i32
    %c0_i32_0 = arith.constant 0 : i32
    %c0_i32_1 = arith.constant 0 : i32
    return %c0_i32, %c0_i32_0 : i32, i32
  }
  func.func @transform_4(%arg0: i32) -> (i32, i32) {
    %c0_i32 = arith.constant 0 : i32
    %c0_i32_0 = arith.constant 0 : i32
    %c0_i32_1 = arith.constant 0 : i32
    return %c0_i32, %c0_i32_0 : i32, i32
  }
  func.func @transform_5(%arg0: i32) -> (i32, i32) {
    %c0_i32 = arith.constant 0 : i32
    %c0_i32_0 = arith.constant 0 : i32
    %c0_i32_1 = arith.constant 0 : i32
    return %c0_i32, %c0_i32_0 : i32, i32
  }
  func.func @transform_6(%arg0: i32) -> (i32, i32) {
    %c0_i32 = arith.constant 0 : i32
    %c0_i32_0 = arith.constant 0 : i32
    %c0_i32_1 = arith.constant 0 : i32
    return %c0_i32, %c0_i32_0 : i32, i32
  }
  func.func @transform_7(%arg0: i32) -> (i32, i32) {
    %c0_i32 = arith.constant 0 : i32
    %c0_i32_0 = arith.constant 0 : i32
    %c0_i32_1 = arith.constant 0 : i32
    return %c0_i32, %c0_i32_0 : i32, i32
  }
  func.func @transform_8(%arg0: i32) -> (i32, i32) {
    %c0_i32 = arith.constant 0 : i32
    %c0_i32_0 = arith.constant 0 : i32
    %c0_i32_1 = arith.constant 0 : i32
    return %c0_i32, %c0_i32_0 : i32, i32
  }
  func.func @transform_9(%arg0: i32) -> (i32, i32) {
    %c0_i32 = arith.constant 0 : i32
    %c0_i32_0 = arith.constant 0 : i32
    return %arg0, %c0_i32 : i32, i32
  }
}

</mosaic_0001>

<llo_original>
// kernel: tpu_custom_call.1
$region0: #{tpu_custom_call.1}
  #allocation0 [shape = 'u32[]', space=smem, size = 0x4, offset = 0x4, fixed_abs, tag = 'smem constant byte address 0x4 - core index']
  #allocation1 [shape = 'u32[72,128]{1,0:T(1,128)}', space=vmem, size = 0x9000, scoped, tag = 'internal scratch']
  %s0 = inlined_call_operand.vmem [shape: f32[32,16], index: 0, kind: input, shape index: {}]
  %s1 = inlined_call_operand.vmem [shape: bf16[16,128], index: 1, kind: input, shape index: {}]
  %s2 = inlined_call_operand.vmem [shape: f32[1,128], index: 2, kind: input, shape index: {}]
  %s3 = inlined_call_operand.vmem [shape: bf16[128,128], index: 3, kind: input, shape index: {}]
  %s4 = inlined_call_operand.vmem [shape: f32[1,128], index: 4, kind: input, shape index: {}]
  %s5 = inlined_call_operand.hbm [shape: bf16[128,128], index: 5, kind: input, shape index: {}]
  %s6 = inlined_call_operand.vmem [shape: f32[1,128], index: 6, kind: input, shape index: {}]
  %s7 = inlined_call_operand.vmem [shape: bf16[128,8], index: 7, kind: input, shape index: {}]
  %s8 = inlined_call_operand.vmem [shape: f32[1,8], index: 8, kind: input, shape index: {}]
  %s9 = inlined_call_operand.vmem [shape: f32[32,8], index: 9, kind: output, shape index: {}]
  %s10 = sld [smem:[#allocation0]]
  $region73: #{tpu_custom_call.1} parent=0
    _
  %s12 = ssub.s32 1, %s10
  %s13 = scalar_select 0, %s12, %s10
  $region1: #{tpu_custom_call.1} parent=0
    #allocation2 [shape = 'u8[32768]{0}', space=vmem, size = 0x8000, scoped, tag = 'input window, operand 5, single buffered']
    #allocation3 [shape = 's32[2]{0}', space=sflag, size = 0x8, scoped, tag = 'scoped memory for tpu_custom_call.1']
    %14 = vsyncpa [#allocation3], 0
    loop: start=0, step=1, limit=4
    $region2: #{tpu_custom_call.1} parent=1 // loop_pre_header
      _
    $region3: #{tpu_custom_call.1} parent=1 // loop_header
      %s16 = sphi 0, %s20
      %p17 = scmp.ge.s32.totalorder %s16, 4
      %s26 = sphi 0, %s28
      %s29 = sphi 0, %s26
      %s30 = sphi 0, %s29
      %s46 = sphi 0, %s30
      %s50 = sphi 0, %s50
      %s52 = sphi 0, %s50
      %s53 = sphi 0, %s52
      %s67 = sphi 0, %s53
      %s71 = sphi 0, %s71
      %s73 = sphi 0, %s71
      %s74 = sphi 0, %s73
      %s88 = sphi 0, %s74
      %s92 = sphi 0, %s92
      %s94 = sphi 0, %s92
      %s95 = sphi 0, %s94
      %s109 = sphi 0, %s95
      %s113 = sphi 0, %s113
      %s115 = sphi 0, %s113
      %s116 = sphi 0, %s115
      %s130 = sphi 0, %s116
      %s134 = sphi 0, %s134
      %s136 = sphi 0, %s134
      %s137 = sphi 0, %s136
      %s151 = sphi 0, %s137
      %s155 = sphi 0, %s155
      %s157 = sphi 0, %s155
      %s158 = sphi 0, %s157
      %s172 = sphi 0, %s158
      %s176 = sphi 0, %s176
      %s178 = sphi 0, %s176
      %s179 = sphi 0, %s178
      %s193 = sphi 0, %s179
      %s197 = sphi 0, %s197
      %s199 = sphi 0, %s197
      %s200 = sphi 0, %s199
      %s214 = sphi 0, %s200
      %s220 = sphi 0, %s222
      %s223 = sphi 0, %s220
      %s224 = sphi 0, %s223
      %s240 = sphi 0, %s224
    $region4: #{tpu_custom_call.1} parent=1 // loop_header_branch
      %19 = sbr.rel (%p17) target = $region8
    $region5: #{tpu_custom_call.1} parent=1 // loop_body
      %s21 = ssub.s32 %s16, 1
      %s22 = ssub.s32 %s16, 2
      %s23 = sadd.s32 %s16, 1
      %s24 = ssub.s32 %s16, %s23
      %p25 = scmp.eq.s32.totalorder %s24, 0
      %s27 = sadd.s32 %s26, 1
      %s28 = scalar_select %p25, %s26, %s27
      %p31 = pneg %p25
      %p32 = scmp.eq.s32.totalorder %s16, 1
      %p33 = por %p31, %p32
      %p34 = scmp.ne.s32.totalorder %s26, %s29
      %p35 = scmp.eq.s32.totalorder %s16, 0
      %p36 = por %p34, %p35
      %p37 = scmp.ne.s32.totalorder %s26, %s29
      %p38 = scmp.eq.s32.totalorder %s21, 1
      %p39 = por %p37, %p38
      %p40 = scmp.ne.s32.totalorder %s29, %s30
      %p41 = scmp.eq.s32.totalorder %s21, 0
      %p42 = por %p40, %p41
      %p43 = scmp.ne.s32.totalorder %s29, %s30
      %p44 = scmp.eq.s32.totalorder %s22, 1
      %p45 = por %p43, %p44
      %p47 = scmp.ne.s32.totalorder %s30, %s46
      %p48 = scmp.eq.s32.totalorder %s22, 0
      %p49 = por %p47, %p48
      %s51 = sadd.s32 %s50, 1
      %p54 = scmp.eq.s32.totalorder %s16, 1
      %p55 = scmp.ne.s32.totalorder %s50, %s52
      %p56 = scmp.eq.s32.totalorder %s16, 0
      %p57 = por %p55, %p56
      %p58 = scmp.ne.s32.totalorder %s50, %s52
      %p59 = scmp.eq.s32.totalorder %s21, 1
      %p60 = por %p58, %p59
      %p61 = scmp.ne.s32.totalorder %s52, %s53
      %p62 = scmp.eq.s32.totalorder %s21, 0
      %p63 = por %p61, %p62
      %p64 = scmp.ne.s32.totalorder %s52, %s53
      %p65 = scmp.eq.s32.totalorder %s22, 1
      %p66 = por %p64, %p65
      %p68 = scmp.ne.s32.totalorder %s53, %s67
      %p69 = scmp.eq.s32.totalorder %s22, 0
      %p70 = por %p68, %p69
      %s72 = sadd.s32 %s71, 1
      %p75 = scmp.eq.s32.totalorder %s16, 1
      %p76 = scmp.ne.s32.totalorder %s71, %s73
      %p77 = scmp.eq.s32.totalorder %s16, 0
      %p78 = por %p76, %p77
      %p79 = scmp.ne.s32.totalorder %s71, %s73
      %p80 = scmp.eq.s32.totalorder %s21, 1
      %p81 = por %p79, %p80
      %p82 = scmp.ne.s32.totalorder %s73, %s74
      %p83 = scmp.eq.s32.totalorder %s21, 0
      %p84 = por %p82, %p83
      %p85 = scmp.ne.s32.totalorder %s73, %s74
      %p86 = scmp.eq.s32.totalorder %s22, 1
      %p87 = por %p85, %p86
      %p89 = scmp.ne.s32.totalorder %s74, %s88
      %p90 = scmp.eq.s32.totalorder %s22, 0
      %p91 = por %p89, %p90
      %s93 = sadd.s32 %s92, 1
      %p96 = scmp.eq.s32.totalorder %s16, 1
      %p97 = scmp.ne.s32.totalorder %s92, %s94
      %p98 = scmp.eq.s32.totalorder %s16, 0
      %p99 = por %p97, %p98
      %p100 = scmp.ne.s32.totalorder %s92, %s94
      %p101 = scmp.eq.s32.totalorder %s21, 1
      %p102 = por %p100, %p101
      %p103 = scmp.ne.s32.totalorder %s94, %s95
      %p104 = scmp.eq.s32.totalorder %s21, 0
      %p105 = por %p103, %p104
      %p106 = scmp.ne.s32.totalorder %s94, %s95
      %p107 = scmp.eq.s32.totalorder %s22, 1
      %p108 = por %p106, %p107
      %p110 = scmp.ne.s32.totalorder %s95, %s109
      %p111 = scmp.eq.s32.totalorder %s22, 0
      %p112 = por %p110, %p111
      %s114 = sadd.s32 %s113, 1
      %p117 = scmp.eq.s32.totalorder %s16, 1
      %p118 = scmp.ne.s32.totalorder %s113, %s115
      %p119 = scmp.eq.s32.totalorder %s16, 0
      %p120 = por %p118, %p119
      %p121 = scmp.ne.s32.totalorder %s113, %s115
      %p122 = scmp.eq.s32.totalorder %s21, 1
      %p123 = por %p121, %p122
      %p124 = scmp.ne.s32.totalorder %s115, %s116
      %p125 = scmp.eq.s32.totalorder %s21, 0
      %p126 = por %p124, %p125
      %p127 = scmp.ne.s32.totalorder %s115, %s116
      %p128 = scmp.eq.s32.totalorder %s22, 1
      %p129 = por %p127, %p128
      %p131 = scmp.ne.s32.totalorder %s116, %s130
      %p132 = scmp.eq.s32.totalorder %s22, 0
      %p133 = por %p131, %p132
      %s135 = sadd.s32 %s134, 1
      %p138 = scmp.eq.s32.totalorder %s16, 1
      %p139 = scmp.ne.s32.totalorder %s134, %s136
      %p140 = scmp.eq.s32.totalorder %s16, 0
      %p141 = por %p139, %p140
      %p142 = scmp.ne.s32.totalorder %s134, %s136
      %p143 = scmp.eq.s32.totalorder %s21, 1
      %p144 = por %p142, %p143
      %p145 = scmp.ne.s32.totalorder %s136, %s137
      %p146 = scmp.eq.s32.totalorder %s21, 0
      %p147 = por %p145, %p146
      %p148 = scmp.ne.s32.totalorder %s136, %s137
      %p149 = scmp.eq.s32.totalorder %s22, 1
      %p150 = por %p148, %p149
      %p152 = scmp.ne.s32.totalorder %s137, %s151
      %p153 = scmp.eq.s32.totalorder %s22, 0
      %p154 = por %p152, %p153
      %s156 = sadd.s32 %s155, 1
      %p159 = scmp.eq.s32.totalorder %s16, 1
      %p160 = scmp.ne.s32.totalorder %s155, %s157
      %p161 = scmp.eq.s32.totalorder %s16, 0
      %p162 = por %p160, %p161
      %p163 = scmp.ne.s32.totalorder %s155, %s157
      %p164 = scmp.eq.s32.totalorder %s21, 1
      %p165 = por %p163, %p164
      %p166 = scmp.ne.s32.totalorder %s157, %s158
      %p167 = scmp.eq.s32.totalorder %s21, 0
      %p168 = por %p166, %p167
      %p169 = scmp.ne.s32.totalorder %s157, %s158
      %p170 = scmp.eq.s32.totalorder %s22, 1
      %p171 = por %p169, %p170
      %p173 = scmp.ne.s32.totalorder %s158, %s172
      %p174 = scmp.eq.s32.totalorder %s22, 0
      %p175 = por %p173, %p174
      %s177 = sadd.s32 %s176, 1
      %p180 = scmp.eq.s32.totalorder %s16, 1
      %p181 = scmp.ne.s32.totalorder %s176, %s178
      %p182 = scmp.eq.s32.totalorder %s16, 0
      %p183 = por %p181, %p182
      %p184 = scmp.ne.s32.totalorder %s176, %s178
      %p185 = scmp.eq.s32.totalorder %s21, 1
      %p186 = por %p184, %p185
      %p187 = scmp.ne.s32.totalorder %s178, %s179
      %p188 = scmp.eq.s32.totalorder %s21, 0
      %p189 = por %p187, %p188
      %p190 = scmp.ne.s32.totalorder %s178, %s179
      %p191 = scmp.eq.s32.totalorder %s22, 1
      %p192 = por %p190, %p191
      %p194 = scmp.ne.s32.totalorder %s179, %s193
      %p195 = scmp.eq.s32.totalorder %s22, 0
      %p196 = por %p194, %p195
      %s198 = sadd.s32 %s197, 1
      %p201 = scmp.eq.s32.totalorder %s16, 1
      %p202 = scmp.ne.s32.totalorder %s197, %s199
      %p203 = scmp.eq.s32.totalorder %s16, 0
      %p204 = por %p202, %p203
      %p205 = scmp.ne.s32.totalorder %s197, %s199
      %p206 = scmp.eq.s32.totalorder %s21, 1
      %p207 = por %p205, %p206
      %p208 = scmp.ne.s32.totalorder %s199, %s200
      %p209 = scmp.eq.s32.totalorder %s21, 0
      %p210 = por %p208, %p209
      %p211 = scmp.ne.s32.totalorder %s199, %s200
      %p212 = scmp.eq.s32.totalorder %s22, 1
      %p213 = por %p211, %p212
      %p215 = scmp.ne.s32.totalorder %s200, %s214
      %p216 = scmp.eq.s32.totalorder %s22, 0
      %p217 = por %p215, %p216
      %s218 = ssub.s32 %s16, %s23
      %p219 = scmp.eq.s32.totalorder %s218, 0
      %s221 = sadd.s32 %s220, 1
      %s222 = scalar_select %p219, %s220, %s221
      %p225 = pneg %p219
      %p226 = scmp.eq.s32.totalorder %s16, 1
      %p227 = por %p225, %p226
      %p228 = scmp.ne.s32.totalorder %s220, %s223
      %p229 = scmp.eq.s32.totalorder %s16, 0
      %p230 = por %p228, %p229
      %p231 = scmp.ne.s32.totalorder %s220, %s223
      %p232 = scmp.eq.s32.totalorder %s21, 1
      %p233 = por %p231, %p232
      %p234 = scmp.ne.s32.totalorder %s223, %s224
      %p235 = scmp.eq.s32.totalorder %s21, 0
      %p236 = por %p234, %p235
      %p237 = scmp.ne.s32.totalorder %s223, %s224
      %p238 = scmp.eq.s32.totalorder %s22, 1
      %p239 = por %p237, %p238
      %p241 = scmp.ne.s32.totalorder %s224, %s240
      %p242 = scmp.eq.s32.totalorder %s22, 0
      %p243 = por %p241, %p242
      %p244 = scmp.le.s32.totalorder 1, %s16
      %p245 = scmp.lt.s32.totalorder %s16, 3
      %p246 = pnand %p244, %p245
      %p247 = pneg %p246
      // Predicated region
      $region9: #{tpu_custom_call.1} parent=5 // pred_check
        _
      $region10: #{tpu_custom_call.1} parent=5 // pred_check_branch
        %249 = sbr.rel (%p246) target = $region12
      $region11: #{tpu_custom_call.1} parent=5 // pred_region
        %s250 = ssub.s32 %s16, 1
        // Predicated region
        $region13: #{tpu_custom_call.1} parent=11 // pred_check
          %p251 = pneg %p63
        $region14: #{tpu_custom_call.1} parent=11 // pred_check_branch
          %253 = sbr.rel (%p251) target = $region16
        $region15: #{tpu_custom_call.1} parent=11 // pred_region
          _
        $region16: #{tpu_custom_call.1} parent=11 // pred_fallthru
          _
        // Predicated region
        $region17: #{tpu_custom_call.1} parent=11 // pred_check
          %p254 = pneg %p84
        $region18: #{tpu_custom_call.1} parent=11 // pred_check_branch
          %256 = sbr.rel (%p254) target = $region20
        $region19: #{tpu_custom_call.1} parent=11 // pred_region
          _
        $region20: #{tpu_custom_call.1} parent=11 // pred_fallthru
          _
        // Predicated region
        $region21: #{tpu_custom_call.1} parent=11 // pred_check
          %p257 = pneg %p105
        $region22: #{tpu_custom_call.1} parent=11 // pred_check_branch
          %259 = sbr.rel (%p257) target = $region24
        $region23: #{tpu_custom_call.1} parent=11 // pred_region
          _
        $region24: #{tpu_custom_call.1} parent=11 // pred_fallthru
          _
        // Predicated region
        $region25: #{tpu_custom_call.1} parent=11 // pred_check
          %p260 = pneg %p126
        $region26: #{tpu_custom_call.1} parent=11 // pred_check_branch
          %262 = sbr.rel (%p260) target = $region28
        $region27: #{tpu_custom_call.1} parent=11 // pred_region
          _
        $region28: #{tpu_custom_call.1} parent=11 // pred_fallthru
          _
        // Predicated region
        $region29: #{tpu_custom_call.1} parent=11 // pred_check
          %p263 = pneg %p147
        $region30: #{tpu_custom_call.1} parent=11 // pred_check_branch
          %265 = sbr.rel (%p263) target = $region32
        $region31: #{tpu_custom_call.1} parent=11 // pred_region
          %267 = vsyncadd [#allocation3], 0
          %s268 = sshll.u32 %s5, 4
          %s269 = int_to_ptr.hbm [resolvable:$true] %s268
          %s270 = sshll.u32 [#allocation2], 4
          %s271 = int_to_ptr.vmem [resolvable:$true] %s270
          %276 = dma.hbm_to_vmem [thread:$0]  %s269, 1024, %s271, [#allocation3], 64, 64, 4
        $region32: #{tpu_custom_call.1} parent=11 // pred_fallthru
          _
        // Predicated region
        $region33: #{tpu_custom_call.1} parent=11 // pred_check
          %p277 = pneg %p168
        $region34: #{tpu_custom_call.1} parent=11 // pred_check_branch
          %279 = sbr.rel (%p277) target = $region36
        $region35: #{tpu_custom_call.1} parent=11 // pred_region
          _
        $region36: #{tpu_custom_call.1} parent=11 // pred_fallthru
          _
        // Predicated region
        $region37: #{tpu_custom_call.1} parent=11 // pred_check
          %p280 = pneg %p189
        $region38: #{tpu_custom_call.1} parent=11 // pred_check_branch
          %282 = sbr.rel (%p280) target = $region40
        $region39: #{tpu_custom_call.1} parent=11 // pred_region
          _
        $region40: #{tpu_custom_call.1} parent=11 // pred_fallthru
          _
        // Predicated region
        $region41: #{tpu_custom_call.1} parent=11 // pred_check
          %p283 = pneg %p210
        $region42: #{tpu_custom_call.1} parent=11 // pred_check_branch
          %285 = sbr.rel (%p283) target = $region44
        $region43: #{tpu_custom_call.1} parent=11 // pred_region
          _
        $region44: #{tpu_custom_call.1} parent=11 // pred_fallthru
          _
      $region12: #{tpu_custom_call.1} parent=5 // pred_fallthru
        _
      %p286 = scmp.lt.s32.totalorder %s16, 2
      // Predicated region
      $region45: #{tpu_custom_call.1} parent=5 // pred_check
        %p287 = pneg %p286
      $region46: #{tpu_custom_call.1} parent=5 // pred_check_branch
        %289 = sbr.rel (%p287) target = $region48
      $region47: #{tpu_custom_call.1} parent=5 // pred_region
        // Predicated region
        $region49: #{tpu_custom_call.1} parent=47 // pred_check
          %p290 = pneg %p36
        $region50: #{tpu_custom_call.1} parent=47 // pred_check_branch
          %292 = sbr.rel (%p290) target = $region52
        $region51: #{tpu_custom_call.1} parent=47 // pred_region
          %s293 = smul.u32 2, %s16
          %p294 = scmp.lt.s32.totalorder %s293, 3
          %s295 = scalar_select %p294, %s293, 3
          %s296 = smul.addr %s295, 8
          %s297 = scalar_lea.vmem %s0, %s296
          %s298 = smul.u32 2, %s16
        $region52: #{tpu_custom_call.1} parent=47 // pred_fallthru
          _
      $region48: #{tpu_custom_call.1} parent=5 // pred_fallthru
        _
      %p299 = scmp.le.s32.totalorder 1, %s16
      %p300 = scmp.lt.s32.totalorder %s16, 3
      %p301 = pnand %p299, %p300
      %p302 = pneg %p301
      // Predicated region
      $region53: #{tpu_custom_call.1} parent=5 // pred_check
        _
      $region54: #{tpu_custom_call.1} parent=5 // pred_check_branch
        %304 = sbr.rel (%p301) target = $region56
      $region55: #{tpu_custom_call.1} parent=5 // pred_region
        %s305 = ssub.s32 %s16, 1
        // Predicated region
        $region57: #{tpu_custom_call.1} parent=55 // pred_check
          %p306 = pneg %p147
        $region58: #{tpu_custom_call.1} parent=55 // pred_check_branch
          %308 = sbr.rel (%p306) target = $region60
        $region59: #{tpu_custom_call.1} parent=55 // pred_region
          %310 = dma.done [#allocation3], 1024
        $region60: #{tpu_custom_call.1} parent=55 // pred_fallthru
          _
        %s311 = smul.u32 2, %s21
        %p312 = scmp.lt.s32.totalorder %s311, 3
        %s313 = scalar_select %p312, %s311, 3
        %s314 = smul.addr %s313, 8
        %s315 = scalar_lea.vmem %s0, %s314
        %p316 = pneg %p42
        %p317 = pneg %p39
        %p318 = pneg %p63
        %p319 = pneg %p60
        %p320 = pneg %p84
        %p321 = pneg %p81
        %p322 = pneg %p105
        %p323 = pneg %p102
        %p324 = pneg %p126
        %p325 = pneg %p123
        %p326 = pneg %p147
        %p327 = pneg %p144
        %p328 = pneg %p168
        %p329 = pneg %p165
        %p330 = pneg %p189
        %p331 = pneg %p186
        %p332 = pneg %p210
        %p333 = pneg %p207
        %p334 = pneg %p236
        %p335 = pneg %p233
        %s336 = smul.u32 2, %s21
        %p337 = scmp.lt.s32.totalorder %s336, 3
        %s338 = scalar_select %p337, %s336, 3
        %s339 = smul.addr %s338, 8
        %s340 = scalar_lea.vmem %s9, %s339
        %s341 = smul.u32 2, %s21
        %p342 = scmp.lt.s32.totalorder %s341, 3
        %s343 = scalar_select %p342, %s341, 3
        %s344 = smul.addr %s343, 8
        %s345 = scalar_lea.vmem %s0, %s344
        %s346 = smul.u32 2, %s21
        %s347 = smul.u32 2, %s21
        %p348 = scmp.lt.s32.totalorder %s347, 3
        %s349 = scalar_select %p348, %s347, 3
        %s350 = smul.addr %s349, 8
        %s351 = scalar_lea.vmem %s9, %s350
        %s352 = smul.u32 2, %s21
        %v354 = vld [vmem:[%s345] sm:$0xff]
        %v355 = vld [vmem:[%s345 + $0x8] sm:$0xff]
        %v356 = vpack.c.bf16 %v355, %v354
        %v357 = vld [vmem:[%s1] sm:$0xf]
        %v358 = vld [vmem:[%s1 + $0x4] sm:$0xf]
        %v359 = vld [vmem:[%s2] sm:$0x1]
        %v361 = vperm.slane %v359, 0
        %v365 = vunpack.c.l.b16 %v357
        %v366 = vunpack.c.l.b16 %v358
        %v367 = vpack.c.b16 %v366, %v365
        %vm369 = vcmask 130048
        %v371 = vsel %vm369, %v356, 0
        %373 = vmatpush.bf16.msra.mxu0 0
        %374 = vmatpush.bf16.msra.mxu0 0
        %375 = vmatpush.bf16.msra.mxu0 0
        %376 = vmatpush.bf16.msra.mxu0 0
        %377 = vmatpush.bf16.msra.mxu0 0
        %378 = vmatpush.bf16.msra.mxu0 0
        %379 = vmatpush.bf16.msra.mxu0 0
        %380 = vmatpush.bf16.msra.mxu0 %v367
        %381 = vmatmul.bf16.gmra.mxu0 %v371
        %v382 = vpop.f32.mrf.mxu0
        %v383 = vadd.f32 %v361, %v382
        %v384 = vpop.f32.mrf.mxu0
        %v385 = vadd.f32 %v361, %v384
        %386 = vdwg.mxu0
        %v387 = vmax.f32 %v383, 0.0
        %v388 = vmax.f32 %v385, 0.0
        %v389 = vpack.c.bf16 %v388, %v387
        %v390 = vld [vmem:[%s3] sm:$0xf]
        %v391 = vld [vmem:[%s3 + $0x4] sm:$0xf]
        %v392 = vld [vmem:[%s3 + $0x8] sm:$0xf]
        %v393 = vld [vmem:[%s3 + $0xc] sm:$0xf]
        %v394 = vld [vmem:[%s3 + $0x10] sm:$0xf]
        %v395 = vld [vmem:[%s3 + $0x14] sm:$0xf]
        %v396 = vld [vmem:[%s3 + $0x18] sm:$0xf]
        %v397 = vld [vmem:[%s3 + $0x1c] sm:$0xf]
        %v398 = vld [vmem:[%s3 + $0x20] sm:$0xf]
        %v399 = vld [vmem:[%s3 + $0x24] sm:$0xf]
        %v400 = vld [vmem:[%s3 + $0x28] sm:$0xf]
        %v401 = vld [vmem:[%s3 + $0x2c] sm:$0xf]
        %v402 = vld [vmem:[%s3 + $0x30] sm:$0xf]
        %v403 = vld [vmem:[%s3 + $0x34] sm:$0xf]
        %v404 = vld [vmem:[%s3 + $0x38] sm:$0xf]
        %v405 = vld [vmem:[%s3 + $0x3c] sm:$0xf]
        %v406 = vld [vmem:[%s4] sm:$0x1]
        %v408 = vperm.slane %v406, 0
        %v426 = vunpack.c.l.b16 %v390
        %v427 = vunpack.c.l.b16 %v391
        %v428 = vunpack.c.l.b16 %v392
        %v429 = vunpack.c.l.b16 %v393
        %v430 = vunpack.c.l.b16 %v394
        %v431 = vunpack.c.l.b16 %v395
        %v432 = vunpack.c.l.b16 %v396
        %v433 = vunpack.c.l.b16 %v397
        %v434 = vunpack.c.l.b16 %v398
        %v435 = vunpack.c.l.b16 %v399
        %v436 = vunpack.c.l.b16 %v400
        %v437 = vunpack.c.l.b16 %v401
        %v438 = vunpack.c.l.b16 %v402
        %v439 = vunpack.c.l.b16 %v403
        %v440 = vunpack.c.l.b16 %v404
        %v441 = vunpack.c.l.b16 %v405
        %v442 = vpack.c.b16 %v427, %v426
        %v443 = vpack.c.b16 %v429, %v428
        %v444 = vpack.c.b16 %v431, %v430
        %v445 = vpack.c.b16 %v433, %v432
        %v446 = vpack.c.b16 %v435, %v434
        %v447 = vpack.c.b16 %v437, %v436
        %v448 = vpack.c.b16 %v439, %v438
        %v449 = vpack.c.b16 %v441, %v440
        %458 = vmatpush.bf16.msra.mxu0 %v449
        %459 = vmatpush.bf16.msra.mxu0 %v448
        %460 = vmatpush.bf16.msra.mxu0 %v447
        %461 = vmatpush.bf16.msra.mxu0 %v446
        %462 = vmatpush.bf16.msra.mxu0 %v445
        %463 = vmatpush.bf16.msra.mxu0 %v444
        %464 = vmatpush.bf16.msra.mxu0 %v443
        %465 = vmatpush.bf16.msra.mxu0 %v442
        %466 = vmatmul.bf16.gmra.mxu0 %v389
        %v467 = vpop.f32.mrf.mxu0
        %v468 = vadd.f32 %v408, %v467
        %v469 = vpop.f32.mrf.mxu0
        %v470 = vadd.f32 %v408, %v469
        %471 = vdwg.mxu0
        %v472 = vmax.f32 %v468, 0.0
        %v473 = vmax.f32 %v470, 0.0
        %v474 = vpack.c.bf16 %v473, %v472
        %v475 = vld [vmem:[#allocation2] sm:$0xf]
        %v476 = vld [vmem:[#allocation2 + $0x4] sm:$0xf]
        %v477 = vld [vmem:[#allocation2 + $0x8] sm:$0xf]
        %v478 = vld [vmem:[#allocation2 + $0xc] sm:$0xf]
        %v479 = vld [vmem:[#allocation2 + $0x10] sm:$0xf]
        %v480 = vld [vmem:[#allocation2 + $0x14] sm:$0xf]
        %v481 = vld [vmem:[#allocation2 + $0x18] sm:$0xf]
        %v482 = vld [vmem:[#allocation2 + $0x1c] sm:$0xf]
        %v483 = vld [vmem:[#allocation2 + $0x20] sm:$0xf]
        %v484 = vld [vmem:[#allocation2 + $0x24] sm:$0xf]
        %v485 = vld [vmem:[#allocation2 + $0x28] sm:$0xf]
        %v486 = vld [vmem:[#allocation2 + $0x2c] sm:$0xf]
        %v487 = vld [vmem:[#allocation2 + $0x30] sm:$0xf]
        %v488 = vld [vmem:[#allocation2 + $0x34] sm:$0xf]
        %v489 = vld [vmem:[#allocation2 + $0x38] sm:$0xf]
        %v490 = vld [vmem:[#allocation2 + $0x3c] sm:$0xf]
        %v491 = vld [vmem:[%s6] sm:$0x1]
        %v493 = vperm.slane %v491, 0
        %v511 = vunpack.c.l.b16 %v475
        %v512 = vunpack.c.l.b16 %v476
        %v513 = vunpack.c.l.b16 %v477
        %v514 = vunpack.c.l.b16 %v478
        %v515 = vunpack.c.l.b16 %v479
        %v516 = vunpack.c.l.b16 %v480
        %v517 = vunpack.c.l.b16 %v481
        %v518 = vunpack.c.l.b16 %v482
        %v519 = vunpack.c.l.b16 %v483
        %v520 = vunpack.c.l.b16 %v484
        %v521 = vunpack.c.l.b16 %v485
        %v522 = vunpack.c.l.b16 %v486
        %v523 = vunpack.c.l.b16 %v487
        %v524 = vunpack.c.l.b16 %v488
        %v525 = vunpack.c.l.b16 %v489
        %v526 = vunpack.c.l.b16 %v490
        %v527 = vpack.c.b16 %v512, %v511
        %v528 = vpack.c.b16 %v514, %v513
        %v529 = vpack.c.b16 %v516, %v515
        %v530 = vpack.c.b16 %v518, %v517
        %v531 = vpack.c.b16 %v520, %v519
        %v532 = vpack.c.b16 %v522, %v521
        %v533 = vpack.c.b16 %v524, %v523
        %v534 = vpack.c.b16 %v526, %v525
        %543 = vmatpush.bf16.msra.mxu0 %v534
        %544 = vmatpush.bf16.msra.mxu0 %v533
        %545 = vmatpush.bf16.msra.mxu0 %v532
        %546 = vmatpush.bf16.msra.mxu0 %v531
        %547 = vmatpush.bf16.msra.mxu0 %v530
        %548 = vmatpush.bf16.msra.mxu0 %v529
        %549 = vmatpush.bf16.msra.mxu0 %v528
        %550 = vmatpush.bf16.msra.mxu0 %v527
        %551 = vmatmul.bf16.gmra.mxu0 %v474
        %v552 = vpop.f32.mrf.mxu0
        %v553 = vadd.f32 %v493, %v552
        %v554 = vpop.f32.mrf.mxu0
        %v555 = vadd.f32 %v493, %v554
        %556 = vdwg.mxu0
        %v557 = vmax.f32 %v553, 0.0
        %v558 = vmax.f32 %v555, 0.0
        %v559 = vpack.c.bf16 %v558, %v557
        %v560 = vld [vmem:[%s7] sm:$0xf]
        %v561 = vld [vmem:[%s7 + $0x4] sm:$0xf]
        %v562 = vld [vmem:[%s7 + $0x8] sm:$0xf]
        %v563 = vld [vmem:[%s7 + $0xc] sm:$0xf]
        %v564 = vld [vmem:[%s7 + $0x10] sm:$0xf]
        %v565 = vld [vmem:[%s7 + $0x14] sm:$0xf]
        %v566 = vld [vmem:[%s7 + $0x18] sm:$0xf]
        %v567 = vld [vmem:[%s7 + $0x1c] sm:$0xf]
        %v568 = vld [vmem:[%s7 + $0x20] sm:$0xf]
        %v569 = vld [vmem:[%s7 + $0x24] sm:$0xf]
        %v570 = vld [vmem:[%s7 + $0x28] sm:$0xf]
        %v571 = vld [vmem:[%s7 + $0x2c] sm:$0xf]
        %v572 = vld [vmem:[%s7 + $0x30] sm:$0xf]
        %v573 = vld [vmem:[%s7 + $0x34] sm:$0xf]
        %v574 = vld [vmem:[%s7 + $0x38] sm:$0xf]
        %v575 = vld [vmem:[%s7 + $0x3c] sm:$0xf]
        %v576 = vld [vmem:[%s8] sm:$0x1]
        %v578 = vperm.slane %v576, 0
        %v596 = vunpack.c.l.b16 %v560
        %v597 = vunpack.c.l.b16 %v561
        %v598 = vunpack.c.l.b16 %v562
        %v599 = vunpack.c.l.b16 %v563
        %v600 = vunpack.c.l.b16 %v564
        %v601 = vunpack.c.l.b16 %v565
        %v602 = vunpack.c.l.b16 %v566
        %v603 = vunpack.c.l.b16 %v567
        %v604 = vunpack.c.l.b16 %v568
        %v605 = vunpack.c.l.b16 %v569
        %v606 = vunpack.c.l.b16 %v570
        %v607 = vunpack.c.l.b16 %v571
        %v608 = vunpack.c.l.b16 %v572
        %v609 = vunpack.c.l.b16 %v573
        %v610 = vunpack.c.l.b16 %v574
        %v611 = vunpack.c.l.b16 %v575
        %v612 = vpack.c.b16 %v597, %v596
        %v613 = vpack.c.b16 %v599, %v598
        %v614 = vpack.c.b16 %v601, %v600
        %v615 = vpack.c.b16 %v603, %v602
        %v616 = vpack.c.b16 %v605, %v604
        %v617 = vpack.c.b16 %v607, %v606
        %v618 = vpack.c.b16 %v609, %v608
        %v619 = vpack.c.b16 %v611, %v610
        %628 = vmatpush.bf16.msra.mxu0 %v619
        %629 = vmatpush.bf16.msra.mxu0 %v618
        %630 = vmatpush.bf16.msra.mxu0 %v617
        %631 = vmatpush.bf16.msra.mxu0 %v616
        %632 = vmatpush.bf16.msra.mxu0 %v615
        %633 = vmatpush.bf16.msra.mxu0 %v614
        %634 = vmatpush.bf16.msra.mxu0 %v613
        %635 = vmatpush.bf16.msra.mxu0 %v612
        %636 = vmatmul.bf16.gmra.mxu0 %v559
        %v637 = vpop.f32.mrf.mxu0
        %v638 = vadd.f32 %v578, %v637
        %v639 = vpop.f32.mrf.mxu0
        %v640 = vadd.f32 %v578, %v639
        %641 = vdwg.mxu0
        %vm642 = vcmask 64512
        %643 = vst.msk [vmem:[%s351] sm:$0xff] %vm642, %v638
        %644 = vst.msk [vmem:[%s351 + $0x8] sm:$0xff] %vm642, %v640
        %s645 = smul.u32 2, %s21
        %p646 = scmp.lt.s32.totalorder %s645, 3
        %s647 = scalar_select %p646, %s645, 3
        %s648 = smul.addr %s647, 8
        %s649 = scalar_lea.vmem %s9, %s648
        // Predicated region
        $region61: #{tpu_custom_call.1} parent=55 // pred_check
          %p650 = pneg %p233
        $region62: #{tpu_custom_call.1} parent=55 // pred_check_branch
          %652 = sbr.rel (%p650) target = $region64
        $region63: #{tpu_custom_call.1} parent=55 // pred_region
          %s653 = smul.u32 2, %s21
        $region64: #{tpu_custom_call.1} parent=55 // pred_fallthru
          _
      $region56: #{tpu_custom_call.1} parent=5 // pred_fallthru
        _
      %p654 = scmp.le.s32.totalorder 2, %s16
      // Predicated region
      $region65: #{tpu_custom_call.1} parent=5 // pred_check
        %p655 = pneg %p654
      $region66: #{tpu_custom_call.1} parent=5 // pred_check_branch
        %657 = sbr.rel (%p655) target = $region68
      $region67: #{tpu_custom_call.1} parent=5 // pred_region
        %s658 = ssub.s32 %s16, 2
        // Predicated region
        $region69: #{tpu_custom_call.1} parent=67 // pred_check
          %p659 = pneg %p239
        $region70: #{tpu_custom_call.1} parent=67 // pred_check_branch
          %661 = sbr.rel (%p659) target = $region72
        $region71: #{tpu_custom_call.1} parent=67 // pred_region
          %s662 = smul.u32 2, %s22
          %p663 = scmp.lt.s32.totalorder %s662, 3
          %s664 = scalar_select %p663, %s662, 3
          %s665 = smul.addr %s664, 8
          %s666 = scalar_lea.vmem %s9, %s665
        $region72: #{tpu_custom_call.1} parent=67 // pred_fallthru
          _
      $region68: #{tpu_custom_call.1} parent=5 // pred_fallthru
        _
    $region6: #{tpu_custom_call.1} parent=1 // loop_footer
      %s20 = sadd.s32 1, %s16
    $region7: #{tpu_custom_call.1} parent=1 // loop_footer_branch
      %15 = sbr.rel target = $region3
    $region8: #{tpu_custom_call.1} parent=1 // loop_exit
      _
    %667 = vsyncpa [#allocation3], 1
    %s668 = scalar_lea.sflag [#allocation3], 1
    %669 = vsyncpa %s668, 1

</llo_original>
